<compile_context>
chip_gen: v5e
topology: v5e:2x2
jax: 0.10.0
libtpu: 0.0.40
codegen_flags: <defaults>
</compile_context>

<pallas_src>
import functools

import jax
import jax.numpy as jnp
from jax.experimental import pallas as pl
from jax.experimental.pallas import tpu as pltpu


_LANE_CHOICES = (2048, 1024, 512, 256, 128)


def _round_up(x, m):
    return ((x + m - 1) // m) * m


def _device_kind():
    try:
        return jax.devices()[0].device_kind.lower()
    except Exception:
        return ""


def _mix_kernel(mix_ref, f1_ref, f2_ref, o_ref, *, compute_dtype):
    # mix_ref: SMEM (1,) f32 -- precomputed sigmoid(w)
    # f1_ref / f2_ref / o_ref: VMEM tiles (block_rows, WIDE)
    mix = mix_ref[0].astype(compute_dtype)
    x1 = f1_ref[...].astype(compute_dtype)
    x2 = f2_ref[...].astype(compute_dtype)
    # x2 + mix*(x1 - x2)  ==  x1*mix + x2*(1 - mix)
    o_ref[...] = (x2 + mix * (x1 - x2)).astype(o_ref.dtype)


def mix_forward(fea1, fea2, w):
    """fea1, fea2: arrays of identical shape/dtype (e.g. NCHW). w: scalar/(1,) f32."""
    assert fea1.shape == fea2.shape, "fea1/fea2 shapes must match"
    assert fea1.dtype == fea2.dtype, "fea1/fea2 dtypes must match"
    assert jnp.issubdtype(fea1.dtype, jnp.floating), "Mix expects floating inputs"

    orig_shape = fea1.shape
    dtype = fea1.dtype
    total = fea1.size

    # Hoisted scalar: sigmoid(w); lives in SMEM inside the kernel.
    mix = jax.nn.sigmoid(jnp.asarray(w, dtype=jnp.float32).reshape(-1)[:1])

    kind = _device_kind()
    is_new_gen = ("v6" in kind) or ("v7" in kind)
    # Pre-v6 chips have no bf16 VALU: upcast sub-f32 inputs there; stay native otherwise.
    if (not is_new_gen) and jnp.dtype(dtype).itemsize < 4:
        compute_dtype = jnp.float32
    else:
        compute_dtype = dtype

    # Lane-dense slab width that divides the element count => no padding copy.
    wide = None
    for cand in _LANE_CHOICES:
        if total % cand == 0:
            wide = cand
            break
    if wide is None:
        # Rare path: element count is not a multiple of 128.  Padded copies or
        # prefix-slice + concat would add full extra HBM passes on a
        # bandwidth-bound op, so let XLA emit the single fused lerp instead
        # (that already sits at the 3N-byte roofline for this case).
        mf = mix[0].astype(jnp.float32)
        out = (fea2.astype(jnp.float32)
               + mf * (fea1.astype(jnp.float32) - fea2.astype(jnp.float32)))
        return out.astype(dtype)

    rows = total // wide
    f1 = fea1.reshape(rows, wide)
    f2 = fea2.reshape(rows, wide)

    itemsize = jnp.dtype(dtype).itemsize
    # ~4 MiB/input blocks on v6e/v7x, ~2 MiB on older generations.
    target_bytes = (4 << 20) if is_new_gen else (2 << 20)

    if rows <= 8:
        block_rows = rows          # full extent (tiny input), single step
    else:
        block_rows = max(8, (target_bytes // (wide * itemsize)) // 8 * 8)
        # Guarantee a multi-step grid (>= ~4 steps) so the DMA pipeline can
        # overlap and the 'parallel' axis has work to shard across v7x's TCs.
        block_rows = min(block_rows, _round_up(pl.cdiv(rows, 4), 8))
        block_rows = min(block_rows, _round_up(rows, 8))

    grid = (pl.cdiv(rows, block_rows),)

    block_bytes = block_rows * wide * itemsize
    # 3 arrays x 2 pipeline buffers x block + headroom; well under physical
    # VMEM on every generation (64 MiB v7x, 128 MiB v5e/v6e).
    vmem_limit = int(min(6 * block_bytes + (8 << 20), 48 << 20))

    out_slab = pl.pallas_call(
        functools.partial(_mix_kernel, compute_dtype=compute_dtype),
        out_shape=jax.ShapeDtypeStruct((rows, wide), dtype),
        grid=grid,
        in_specs=[
            pl.BlockSpec(memory_space=pltpu.SMEM),               # sigmoid(w)
            pl.BlockSpec((block_rows, wide), lambda i: (i, 0)),  # fea1 tile
            pl.BlockSpec((block_rows, wide), lambda i: (i, 0)),  # fea2 tile
        ],
        out_specs=pl.BlockSpec((block_rows, wide), lambda i: (i, 0)),
        compiler_params=pltpu.CompilerParams(
            dimension_semantics=("parallel",),
            vmem_limit_bytes=vmem_limit,
        ),
    )(mix, f1, f2)

    return out_slab.reshape(orig_shape)


if __name__ == "__main__":
    # Deterministic parameter init, matching Mix(m=-0.8)
    m = -0.8
    w_param = jnp.array([m], dtype=jnp.float32)
    mf = jax.nn.sigmoid(w_param[0])

    key = jax.random.PRNGKey(0)
    k1, k2, k3, k4, k5, k6 = jax.random.split(key, 6)

    # 1) Small NCHW demo matching the PyTorch module's usage: 2x4x16x16.
    fea1 = jax.random.normal(k1, (2, 4, 16, 16), dtype=jnp.float32)
    fea2 = jax.random.normal(k2, (2, 4, 16, 16), dtype=jnp.float32)
    out = jax.block_until_ready(mix_forward(fea1, fea2, w_param))
    ref = fea1 * mf + fea2 * (1.0 - mf)
    assert jnp.allclose(out, ref, atol=1e-5, rtol=1e-5), "mismatch vs reference"

    # 2) Multi-step grid with a partial edge block (rows=144, block_rows=40 -> grid=(4,)).
    f1b = jax.random.normal(k3, (3, 8, 96, 128), dtype=jnp.float32)
    f2b = jax.random.normal(k4, (3, 8, 96, 128), dtype=jnp.float32)
    outb = jax.block_until_ready(mix_forward(f1b, f2b, w_param))
    refb = f1b * mf + f2b * (1.0 - mf)
    assert jnp.allclose(outb, refb, atol=1e-5, rtol=1e-5), "mismatch (tiled path)"

    # 3) bf16 path (native lerp on v6e/v7x, f32-upcast on older generations).
    f1c = jax.random.normal(k5, (2, 8, 32, 128), dtype=jnp.bfloat16)
    f2c = jax.random.normal(k6, (2, 8, 32, 128), dtype=jnp.bfloat16)
    outc = jax.block_until_ready(mix_forward(f1c, f2c, w_param))
    refc = f1c.astype(jnp.float32) * mf + f2c.astype(jnp.float32) * (1.0 - mf)
    assert jnp.allclose(outc.astype(jnp.float32), refc, atol=1e-1, rtol=5e-2), \
        "mismatch (bf16 path)"

    # 4) Non-128-multiple element count -> fused-XLA fallback path (no padding copies).
    f1d = jax.random.normal(k1, (2, 3, 5, 7), dtype=jnp.float32)
    f2d = jax.random.normal(k2, (2, 3, 5, 7), dtype=jnp.float32)
    outd = jax.block_until_ready(mix_forward(f1d, f2d, w_param))
    refd = f1d * mf + f2d * (1.0 - mf)
    assert jnp.allclose(outd, refd, atol=1e-5, rtol=1e-5), "mismatch (fallback path)"

    print("KERNEL_OK")
</pallas_src>

<mosaic_0001>
module attributes {stable_mosaic.version = 11 : i64} {
  func.func @_mix_kernel(%arg0: i32, %arg1: memref<1xf32, #tpu.memory_space<smem>>, %arg2: memref<1x2048xf32, #tpu.memory_space<vmem>>, %arg3: memref<1x2048xf32, #tpu.memory_space<vmem>>, %arg4: memref<1x2048xf32, #tpu.memory_space<vmem>>) attributes {dimension_semantics = [#tpu.dimension_semantics<parallel>], iteration_bounds = array<i64: 1>, scalar_prefetch = 0 : i64, scratch_operands = 0 : i64, tpu.core_type = #tpu.core_type<tc>, window_params = [{transform_indices = @transform_0, window_bounds = array<i64: 1>}, {transform_indices = @transform_1, window_bounds = array<i64: 1, 2048>}, {transform_indices = @transform_2, window_bounds = array<i64: 1, 2048>}, {transform_indices = @transform_3, window_bounds = array<i64: 1, 2048>}]} {
    %c0 = arith.constant 0 : index
    %0 = memref.load %arg1[%c0] : memref<1xf32, #tpu.memory_space<smem>>
    %c0_0 = arith.constant 0 : index
    %c0_1 = arith.constant 0 : index
    %1 = vector.load %arg2[%c0_0, %c0_1] : memref<1x2048xf32, #tpu.memory_space<vmem>>, vector<1x2048xf32>
    %c0_2 = arith.constant 0 : index
    %c0_3 = arith.constant 0 : index
    %2 = vector.load %arg3[%c0_2, %c0_3] : memref<1x2048xf32, #tpu.memory_space<vmem>>, vector<1x2048xf32>
    %3 = arith.subf %1, %2 : vector<1x2048xf32>
    %4 = vector.broadcast %0 : f32 to vector<1x2048xf32>
    %5 = arith.mulf %4, %3 : vector<1x2048xf32>
    %6 = arith.addf %2, %5 : vector<1x2048xf32>
    %c0_4 = arith.constant 0 : index
    %c0_5 = arith.constant 0 : index
    %7 = vector.load %arg4[%c0_4, %c0_5] : memref<1x2048xf32, #tpu.memory_space<vmem>>, vector<1x2048xf32>
    tpu.vector_store %arg4[%c0_4, %c0_5], %6 {strides = array<i32>} : memref<1x2048xf32, #tpu.memory_space<vmem>>, vector<1x2048xf32>,
    return
  }
  func.func @transform_0(%arg0: i32) -> i32 {
    %c0_i32 = arith.constant 0 : i32
    %c0_i32_0 = arith.constant 0 : i32
    return %c0_i32 : i32
  }
  func.func @transform_1(%arg0: i32) -> (i32, i32) {
    %c0_i32 = arith.constant 0 : i32
    %c0_i32_0 = arith.constant 0 : i32
    return %arg0, %c0_i32 : i32, i32
  }
  func.func @transform_2(%arg0: i32) -> (i32, i32) {
    %c0_i32 = arith.constant 0 : i32
    %c0_i32_0 = arith.constant 0 : i32
    return %arg0, %c0_i32 : i32, i32
  }
  func.func @transform_3(%arg0: i32) -> (i32, i32) {
    %c0_i32 = arith.constant 0 : i32
    %c0_i32_0 = arith.constant 0 : i32
    return %arg0, %c0_i32 : i32, i32
  }
}

</mosaic_0001>

<llo_original>
// kernel: tpu_custom_call.1
$region0: #{tpu_custom_call.1}
  #allocation0 [shape = 'u32[]', space=smem, size = 0x4, offset = 0x4, fixed_abs, tag = 'smem constant byte address 0x4 - core index']
  #allocation1 [shape = 'u32[72,128]{1,0:T(1,128)}', space=vmem, size = 0x9000, scoped, tag = 'internal scratch']
  #allocation2 [shape = 'f32[1]{0:T(128)S(6)}', space=smem, size = 0x200, scoped, tag = 'scoped memory for tpu_custom_call.1']
  %s0 = inlined_call_operand.<no memory space> [shape: f32[1], index: 0, kind: input, shape index: {}]
  %s1 = inlined_call_operand.hbm [shape: f32[1,2048], index: 1, kind: input, shape index: {}]
  %s2 = inlined_call_operand.hbm [shape: f32[1,2048], index: 2, kind: input, shape index: {}]
  %s3 = inlined_call_operand.hbm [shape: f32[1,2048], index: 3, kind: output, shape index: {}]
  %s4 = sld [smem:[#allocation0]]
  $region30: #{tpu_custom_call.1} parent=0
    _
  %s6 = ssub.s32 1, %s4
  %s7 = scalar_select 0, %s6, %s4
  %8 = sst [smem:[#allocation2]] %s0
  $region1: #{tpu_custom_call.1} parent=0
    #allocation3 [shape = 'u8[8192]{0}', space=vmem, size = 0x2000, scoped, tag = 'input window, operand 1, single buffered']
    #allocation4 [shape = 's32[1]{0}', space=sflag, size = 0x4, scoped, tag = 'scoped memory for tpu_custom_call.1']
    #allocation5 [shape = 's32[1]{0}', space=sflag, size = 0x4, scoped, tag = 'scoped memory for tpu_custom_call.1']
    #allocation6 [shape = 'u8[8192]{0}', space=vmem, size = 0x2000, scoped, tag = 'input window, operand 2, single buffered']
    #allocation7 [shape = 's32[1]{0}', space=sflag, size = 0x4, scoped, tag = 'scoped memory for tpu_custom_call.1']
    #allocation8 [shape = 'u8[8192]{0}', space=vmem, size = 0x2000, scoped, tag = 'output window, operand 0, single buffered']
    %9 = vsyncpa [#allocation4], 0
    %10 = vsyncpa [#allocation7], 0
    %11 = vsyncpa [#allocation5], 0
    // Predicated region
    $region2: #{tpu_custom_call.1} parent=1 // pred_check
      _
    $region3: #{tpu_custom_call.1} parent=1 // pred_check_branch
      %13 = sbr.rel (0) target = $region5
    $region4: #{tpu_custom_call.1} parent=1 // pred_region
      _
    $region5: #{tpu_custom_call.1} parent=1 // pred_fallthru
      _
    // Predicated region
    $region6: #{tpu_custom_call.1} parent=1 // pred_check
      _
    $region7: #{tpu_custom_call.1} parent=1 // pred_check_branch
      %15 = sbr.rel (0) target = $region9
    $region8: #{tpu_custom_call.1} parent=1 // pred_region
      %17 = vsyncadd [#allocation4], 0
      %s19 = sshll.u32 %s1, 4
      %s20 = int_to_ptr.hbm [resolvable:$true] %s19
      %s21 = sshll.u32 [#allocation3], 4
      %s22 = int_to_ptr.vmem [resolvable:$true] %s21
      %24 = dma.hbm_to_vmem [thread:$0]  %s20, 256, %s22, [#allocation4]
    $region9: #{tpu_custom_call.1} parent=1 // pred_fallthru
      _
    // Predicated region
    $region10: #{tpu_custom_call.1} parent=1 // pred_check
      _
    $region11: #{tpu_custom_call.1} parent=1 // pred_check_branch
      %26 = sbr.rel (0) target = $region13
    $region12: #{tpu_custom_call.1} parent=1 // pred_region
      %28 = vsyncadd [#allocation7], 0
      %s30 = sshll.u32 %s2, 4
      %s31 = int_to_ptr.hbm [resolvable:$true] %s30
      %s32 = sshll.u32 [#allocation6], 4
      %s33 = int_to_ptr.vmem [resolvable:$true] %s32
      %35 = dma.hbm_to_vmem [thread:$0]  %s31, 256, %s33, [#allocation7]
    $region13: #{tpu_custom_call.1} parent=1 // pred_fallthru
      _
    // Predicated region
    $region14: #{tpu_custom_call.1} parent=1 // pred_check
      _
    $region15: #{tpu_custom_call.1} parent=1 // pred_check_branch
      %37 = sbr.rel (0) target = $region17
    $region16: #{tpu_custom_call.1} parent=1 // pred_region
      %39 = dma.done [#allocation4], 256
    $region17: #{tpu_custom_call.1} parent=1 // pred_fallthru
      _
    // Predicated region
    $region18: #{tpu_custom_call.1} parent=1 // pred_check
      _
    $region19: #{tpu_custom_call.1} parent=1 // pred_check_branch
      %41 = sbr.rel (0) target = $region21
    $region20: #{tpu_custom_call.1} parent=1 // pred_region
      %43 = dma.done [#allocation7], 256
    $region21: #{tpu_custom_call.1} parent=1 // pred_fallthru
      _
    %s44 = sld [smem:[#allocation2]]
    %v45 = vld [vmem:[#allocation3] sm:$0xff]
    %v46 = vld [vmem:[#allocation3 + $0x8] sm:$0xff]
    %v47 = vld [vmem:[#allocation6] sm:$0xff]
    %v48 = vld [vmem:[#allocation6 + $0x8] sm:$0xff]
    %v49 = vsub.f32 %v45, %v47
    %v50 = vsub.f32 %v46, %v48
    %v51 = vstv %s44
    %v52 = vmul.f32 %v51, %v49
    %v53 = vmul.f32 %v51, %v50
    %v54 = vadd.f32 %v47, %v52
    %v55 = vadd.f32 %v48, %v53
    %56 = vst [vmem:[#allocation8] sm:$0xff] %v54
    %57 = vst [vmem:[#allocation8 + $0x8] sm:$0xff] %v55
    // Predicated region
    $region22: #{tpu_custom_call.1} parent=1 // pred_check
      _
    $region23: #{tpu_custom_call.1} parent=1 // pred_check_branch
      %59 = sbr.rel (0) target = $region25
    $region24: #{tpu_custom_call.1} parent=1 // pred_region
      %61 = vsyncadd [#allocation5], 0
      %s63 = sshll.u32 [#allocation8], 4
      %s64 = int_to_ptr.vmem [resolvable:$true] %s63
      %s65 = sshll.u32 %s3, 4
      %s66 = int_to_ptr.hbm [resolvable:$true] %s65
      %68 = dma.vmem_to_hbm [thread:$0]  %s64, 256, %s66, [#allocation5]
    $region25: #{tpu_custom_call.1} parent=1 // pred_fallthru
      _
    // Predicated region
    $region26: #{tpu_custom_call.1} parent=1 // pred_check
      _
    $region27: #{tpu_custom_call.1} parent=1 // pred_check_branch
      %70 = sbr.rel (0) target = $region29
    $region28: #{tpu_custom_call.1} parent=1 // pred_region
      %72 = dma.done [#allocation5], 256
    $region29: #{tpu_custom_call.1} parent=1 // pred_fallthru
      _
    %73 = vsyncpa [#allocation4], 1
    %74 = vsyncpa [#allocation7], 1
    %75 = vsyncpa [#allocation5], 1

</llo_original>
